<compile_context>
chip_gen: v5e
topology: v5e:2x2
jax: 0.10.0
libtpu: 0.0.40
codegen_flags: <defaults>
</compile_context>

<pallas_src>
import functools

import jax
import jax.numpy as jnp
import numpy as np
from jax import lax
from jax.experimental import pallas as pl
from jax.experimental.pallas import tpu as pltpu


def object_neck_kernel(x_ref, wpix_ref, wproj_ref, wobj_ref, mask_ref, fold_ref,
                       zg_ref, ov_ref, m_sc, l_sc, acc_sc, xsum_sc, *,
                       inv_scale, norm_eps_sq, inv_hw):
    s = pl.program_id(1)

    @pl.when(s == 0)
    def _():
        m_sc[...] = jnp.full_like(m_sc, -jnp.inf)
        l_sc[...] = jnp.zeros_like(l_sc)
        acc_sc[...] = jnp.zeros_like(acc_sc)
        xsum_sc[...] = jnp.zeros_like(xsum_sc)

    # x streams in its native dtype; the bf16 VPU cast hides under the MXU matmuls.
    x_bf = x_ref[...].astype(jnp.bfloat16)                                  # (C, T)
    T = x_bf.shape[1]

    # Running spatial sum of x (for z_g), kept lane-dense as a (1, C) row via a one-row
    # MXU contraction (avoids an XLU lane-reduce + transpose).
    ones_row = jnp.ones((1, T), jnp.bfloat16)
    xsum_sc[...] += lax.dot_general(ones_row, x_bf, (((1,), (1,)), ((), ())),
                                    preferred_element_type=jnp.float32)     # (1, C)

    # proj_pixel on this spatial tile: the single streamed MXU matmul (W_proj not fused in).
    z_feat = jnp.dot(wpix_ref[...], x_bf, preferred_element_type=jnp.float32)  # (OUT, T)

    # Channel-wise L2 norm (F.normalize, dim=1) fused with 1/scale via EUP rsqrt:
    # 1 / max(||z||, eps) == rsqrt(max(||z||^2, eps^2))
    ssq = jnp.sum(z_feat * z_feat, axis=0, keepdims=True)                   # (1, T)
    inv_norm = lax.rsqrt(jnp.maximum(ssq, norm_eps_sq)) * inv_scale
    logits = z_feat * inv_norm                                              # (OUT, T) f32

    # Online softmax over the spatial axis (flash-style m / l / acc carry).
    m_prev = m_sc[...]                                                      # (OUT, 1)
    m_new = jnp.maximum(m_prev, jnp.max(logits, axis=-1, keepdims=True))
    alpha = jnp.exp(m_prev - m_new)
    p = jnp.exp(logits - m_new)                                             # (OUT, T)
    l_sc[...] = alpha * l_sc[...] + jnp.sum(p, axis=-1, keepdims=True)
    # G^T[q, c] accumulation: one well-shaped MXU matmul contracting the spatial axis.
    acc_sc[...] = alpha * acc_sc[...] + lax.dot_general(
        p.astype(jnp.bfloat16), x_bf, (((1,), (1,)), ((), ())),
        preferred_element_type=jnp.float32)                                 # (OUT, C)
    m_sc[...] = m_new

    @pl.when(s == pl.num_programs(1) - 1)
    def _():
        # Normalize, then per-head block-diagonal selection via the precomputed mask.
        inv_l = pl.reciprocal(l_sc[...], approx=True)                       # (OUT, 1)
        gt = acc_sc[...] * inv_l * mask_ref[...]                            # (OUT, C)
        # Fold the per-head query index: (d_o, OUT) @ (OUT, C) -> (d_o, C); then proj_obj
        # transposed: (d_o, C) . (OUT, C)^T -> (d_o, OUT), lane-dense store over OUT.
        obj_t = jnp.dot(fold_ref[...], gt.astype(jnp.bfloat16),
                        preferred_element_type=jnp.float32)                 # (d_o, C)
        ov_ref[...] = lax.dot_general(obj_t.astype(jnp.bfloat16), wobj_ref[...],
                                      (((1,), (1,)), ((), ())),
                                      preferred_element_type=jnp.float32)   # (d_o, OUT)
        # z_g = W_proj @ mean_s(x): tiny (1,C)x(OUT,C)^T dot, lane-dense (1, OUT) store.
        xmean = (xsum_sc[...] * inv_hw).astype(jnp.bfloat16)                # (1, C)
        zg_ref[...] = lax.dot_general(xmean, wproj_ref[...], (((1,), (1,)), ((), ())),
                                      preferred_element_type=jnp.float32)   # (1, OUT)


def _pick_tile_hw(hw):
    # Lane-dense spatial tiles (multiples of 128); fall back to the full extent when H*W
    # is not 128-aligned.  TODO(synk): ragged last tile for non-128-aligned H*W.
    if hw % 128 != 0:
        return hw
    for t in (512, 256, 128):
        if hw % t == 0:
            return t
    return hw


def object_neck_forward(x, w_proj, w_pixel, w_obj, *, num_heads=8, scale=1.0, tile_hw=None):
    B, C, H, W = x.shape
    HW = H * W
    OUT = w_proj.shape[0]
    assert C % num_heads == 0 and OUT % num_heads == 0
    d_c = C // num_heads
    d_o = OUT // num_heads

    if tile_hw is None:
        tile_hw = _pick_tile_hw(HW)
    assert HW % tile_hw == 0, "tile_hw must divide H*W"
    n_hw = HW // tile_hw

    # x streams in its native dtype (bf16 cast happens inside the kernel); reshape is free.
    xf = x.reshape(B, C, HW)
    wpix = w_pixel.astype(jnp.bfloat16)
    wproj = w_proj.astype(jnp.bfloat16)
    wobj = w_obj.astype(jnp.bfloat16)

    # Grid-invariant head-selection operands, built once (not rebuilt from iotas per step).
    q = np.arange(OUT)
    c = np.arange(C)
    head_mask = jnp.asarray((q[:, None] // d_o) == (c[None, :] // d_c), dtype=jnp.float32)
    fold_t = jnp.asarray(np.arange(d_o)[:, None] == (q[None, :] % d_o), dtype=jnp.bfloat16)

    kernel = functools.partial(object_neck_kernel, inv_scale=1.0 / float(scale),
                               norm_eps_sq=1e-24, inv_hw=1.0 / float(HW))

    # Explicit VMEM budget: double-buffered x tile + resident weights/mask + f32
    # intermediates/scratch, with 2x headroom, capped below v7x's 64 MiB physical VMEM.
    est = (2 * C * tile_hw * xf.dtype.itemsize        # double-buffered x stream
           + 5 * OUT * C * 4                          # resident weights/mask + G^T scratch
           + 8 * OUT * tile_hw * 4                    # z_feat / logits / exp intermediates
           + 4 * (2 * OUT + d_o * OUT + C) * 4)       # m/l/xsum scratch + small outputs
    vmem_limit = int(min(64 * 2**20, max(4 * 2**20, 2 * est)))

    zg_row, ov_t = pl.pallas_call(
        kernel,
        out_shape=(jax.ShapeDtypeStruct((B, 1, OUT), jnp.float32),
                   jax.ShapeDtypeStruct((B, d_o, OUT), jnp.float32)),
        grid_spec=pltpu.PrefetchScalarGridSpec(
            num_scalar_prefetch=0,
            grid=(B, n_hw),                            # softmax/spatial axis last
            in_specs=[
                # TODO(synk): if xprof shows exposed DMA on the x stream, add
                #             pipeline_mode=pl.Buffered(3) here (VMEM permitting).
                pl.BlockSpec((None, C, tile_hw), lambda b, s: (b, 0, s)),
                pl.BlockSpec((OUT, C), lambda b, s: (0, 0)),    # W_pixel, resident
                pl.BlockSpec((OUT, C), lambda b, s: (0, 0)),    # W_proj,  resident
                pl.BlockSpec((OUT, C), lambda b, s: (0, 0)),    # W_obj,   resident
                pl.BlockSpec((OUT, C), lambda b, s: (0, 0)),    # head mask, resident
                pl.BlockSpec((d_o, OUT), lambda b, s: (0, 0)),  # fold matrix, resident
            ],
            out_specs=[
                pl.BlockSpec((None, 1, OUT), lambda b, s: (b, 0, 0)),
                pl.BlockSpec((None, d_o, OUT), lambda b, s: (b, 0, 0)),
            ],
            scratch_shapes=[
                pltpu.VMEM((OUT, 1), jnp.float32),   # running max m
                pltpu.VMEM((OUT, 1), jnp.float32),   # running softmax denom l
                pltpu.VMEM((OUT, C), jnp.float32),   # running G^T = attn @ x^T
                pltpu.VMEM((1, C), jnp.float32),     # running spatial sum of x (for z_g)
            ]),
        compiler_params=pltpu.CompilerParams(
            # Batch axis parallel: feeds both v7x TensorCores when B >= 2.
            # TODO(synk): on single-TC chips (v5e/v6e) with tiny B and HW, fold the batch
            #             into the block to shave the ~0.35 us/step grid overhead.
            dimension_semantics=("parallel", "arbitrary"),
            vmem_limit_bytes=vmem_limit),
    )(xf, wpix, wproj, wobj, head_mask, fold_t)

    z_g = jnp.transpose(zg_row, (0, 2, 1))      # (B, OUT, 1), matches the module
    obj_val = jnp.transpose(ov_t, (0, 2, 1))    # (B, OUT, d_o), matches the module
    return z_g, obj_val


def object_neck_reference(x, w_proj, w_pixel, w_obj, *, num_heads=8, scale=1.0):
    """Pure-JAX reference matching the PyTorch forward (mask_type='group')."""
    B, C, H, W = x.shape
    HW = H * W
    xf = x.reshape(B, C, HW)
    x_pool = jnp.mean(xf, axis=2, keepdims=True)
    z_g = jnp.einsum('oc,bci->boi', w_proj, x_pool)
    z_feat = jnp.einsum('oc,bcs->bos', w_pixel, xf)
    norm = jnp.sqrt(jnp.sum(z_feat ** 2, axis=1, keepdims=True))
    attn = z_feat / jnp.maximum(norm, 1e-12) / scale
    attn = jax.nn.softmax(attn, axis=-1)
    OUT = w_proj.shape[0]
    xh = xf.reshape(B, num_heads, C // num_heads, HW)
    ah = attn.reshape(B, num_heads, OUT // num_heads, HW)
    ov = jnp.einsum('bhcs,bhqs->bhcq', xh, ah).reshape(B, C, OUT // num_heads)
    ov = jnp.einsum('oc,bcq->boq', w_obj, ov)
    return z_g, ov


if __name__ == "__main__":
    # Small shapes consistent with the module: in_channels = out_channels = 32,
    # num_heads = 8 (per-head dims divide evenly), spatial 16x16, batch 2.
    B, C, H, W = 2, 32, 16, 16
    OUT = 32
    NUM_HEADS = 8
    SCALE = 1.0

    key = jax.random.PRNGKey(0)
    kx, k1, k2, k3 = jax.random.split(key, 4)
    x = jax.random.normal(kx, (B, C, H, W), dtype=jnp.float32)
    # 1x1 Conv1d weights (bias=False), deterministic init.
    w_proj = jax.random.normal(k1, (OUT, C), dtype=jnp.float32) * 0.05
    w_pixel = jax.random.normal(k2, (OUT, C), dtype=jnp.float32) * 0.05
    w_obj = jax.random.normal(k3, (OUT, C), dtype=jnp.float32) * 0.05

    # tile_hw=128 -> two spatial grid steps: exercises the online-softmax accumulation.
    z_g, obj_val = object_neck_forward(x, w_proj, w_pixel, w_obj,
                                       num_heads=NUM_HEADS, scale=SCALE, tile_hw=128)
    jax.block_until_ready((z_g, obj_val))

    # Reference with the same bf16 rounding the kernel applies to its MXU operands; math in
    # f32.  Tolerances absorb bf16 rounding of in-kernel intermediates (p, G^T, folded obj)
    # and the approximate reciprocal used for the softmax denominator.
    bf = lambda a: a.astype(jnp.bfloat16).astype(jnp.float32)
    z_g_ref, obj_val_ref = object_neck_reference(bf(x), bf(w_proj), bf(w_pixel), bf(w_obj),
                                                 num_heads=NUM_HEADS, scale=SCALE)

    assert z_g.shape == (B, OUT, 1)
    assert obj_val.shape == (B, OUT, OUT // NUM_HEADS)
    np.testing.assert_allclose(np.asarray(z_g), np.asarray(z_g_ref),
                               rtol=2e-2, atol=5e-3)
    np.testing.assert_allclose(np.asarray(obj_val), np.asarray(obj_val_ref),
                               rtol=2e-2, atol=5e-3)
    print("KERNEL_OK")
</pallas_src>

<mosaic_0001>
module attributes {stable_mosaic.version = 11 : i64} {
  func.func @object_neck_kernel(%arg0: i32, %arg1: i32, %arg2: memref<1x32x128xf32, #tpu.memory_space<vmem>>, %arg3: memref<32x32xbf16, #tpu.memory_space<vmem>>, %arg4: memref<32x32xbf16, #tpu.memory_space<vmem>>, %arg5: memref<32x32xbf16, #tpu.memory_space<vmem>>, %arg6: memref<32x32xf32, #tpu.memory_space<vmem>>, %arg7: memref<4x32xbf16, #tpu.memory_space<vmem>>, %arg8: memref<1x1x32xf32, #tpu.memory_space<vmem>>, %arg9: memref<1x4x32xf32, #tpu.memory_space<vmem>>, %arg10: memref<32x1xf32, #tpu.memory_space<vmem>>, %arg11: memref<32x1xf32, #tpu.memory_space<vmem>>, %arg12: memref<32x32xf32, #tpu.memory_space<vmem>>, %arg13: memref<1x32xf32, #tpu.memory_space<vmem>>) attributes {dimension_semantics = [#tpu.dimension_semantics<parallel>, #tpu.dimension_semantics<arbitrary>], iteration_bounds = array<i64: 2, 2>, scalar_prefetch = 0 : i64, scratch_operands = 4 : i64, tpu.core_type = #tpu.core_type<tc>, window_params = [{transform_indices = @transform_0, window_bounds = array<i64: 1, 32, 128>}, {pipeline_mode = #tpu.pipeline_mode<synchronous>, transform_indices = @transform_1, window_bounds = array<i64: 32, 32>}, {pipeline_mode = #tpu.pipeline_mode<synchronous>, transform_indices = @transform_2, window_bounds = array<i64: 32, 32>}, {pipeline_mode = #tpu.pipeline_mode<synchronous>, transform_indices = @transform_3, window_bounds = array<i64: 32, 32>}, {pipeline_mode = #tpu.pipeline_mode<synchronous>, transform_indices = @transform_4, window_bounds = array<i64: 32, 32>}, {pipeline_mode = #tpu.pipeline_mode<synchronous>, transform_indices = @transform_5, window_bounds = array<i64: 4, 32>}, {transform_indices = @transform_6, window_bounds = array<i64: 1, 1, 32>}, {transform_indices = @transform_7, window_bounds = array<i64: 1, 4, 32>}]} {
    %c0_i32 = arith.constant 0 : i32
    %0 = arith.cmpi eq, %arg1, %c0_i32 : i32
    %1 = arith.extui %0 : i1 to i32
    %c0_i32_0 = arith.constant 0 : i32
    %2 = arith.cmpi ne, %1, %c0_i32_0 : i32
    scf.if %2 {
      %cst_30 = arith.constant 0xFF800000 : f32
      %49 = vector.broadcast %cst_30 : f32 to vector<32x1xf32>
      %c0_31 = arith.constant 0 : index
      %c0_32 = arith.constant 0 : index
      %50 = vector.load %arg10[%c0_31, %c0_32] : memref<32x1xf32, #tpu.memory_space<vmem>>, vector<32x1xf32>
      tpu.vector_store %arg10[%c0_31, %c0_32], %49 {strides = array<i32>} : memref<32x1xf32, #tpu.memory_space<vmem>>, vector<32x1xf32>,
      %cst_33 = arith.constant 0.000000e+00 : f32
      %51 = vector.broadcast %cst_33 : f32 to vector<32x1xf32>
      %c0_34 = arith.constant 0 : index
      %c0_35 = arith.constant 0 : index
      %52 = vector.load %arg11[%c0_34, %c0_35] : memref<32x1xf32, #tpu.memory_space<vmem>>, vector<32x1xf32>
      tpu.vector_store %arg11[%c0_34, %c0_35], %51 {strides = array<i32>} : memref<32x1xf32, #tpu.memory_space<vmem>>, vector<32x1xf32>,
      %cst_36 = arith.constant 0.000000e+00 : f32
      %53 = vector.broadcast %cst_36 : f32 to vector<32x32xf32>
      %c0_37 = arith.constant 0 : index
      %c0_38 = arith.constant 0 : index
      %54 = vector.load %arg12[%c0_37, %c0_38] : memref<32x32xf32, #tpu.memory_space<vmem>>, vector<32x32xf32>
      tpu.vector_store %arg12[%c0_37, %c0_38], %53 {strides = array<i32>} : memref<32x32xf32, #tpu.memory_space<vmem>>, vector<32x32xf32>,
      %cst_39 = arith.constant 0.000000e+00 : f32
      %55 = vector.broadcast %cst_39 : f32 to vector<1x32xf32>
      %c0_40 = arith.constant 0 : index
      %c0_41 = arith.constant 0 : index
      %56 = vector.load %arg13[%c0_40, %c0_41] : memref<1x32xf32, #tpu.memory_space<vmem>>, vector<1x32xf32>
      tpu.vector_store %arg13[%c0_40, %c0_41], %55 {strides = array<i32>} : memref<1x32xf32, #tpu.memory_space<vmem>>, vector<1x32xf32>,
    } else {
    }
    %c0 = arith.constant 0 : index
    %c0_1 = arith.constant 0 : index
    %c0_2 = arith.constant 0 : index
    %3 = vector.load %arg2[%c0, %c0_1, %c0_2] : memref<1x32x128xf32, #tpu.memory_space<vmem>>, vector<1x32x128xf32>
    %4 = vector.shape_cast %3 : vector<1x32x128xf32> to vector<32x128xf32>
    %5 = arith.truncf %4 : vector<32x128xf32> to vector<32x128xbf16>
    %cst = arith.constant 1.000000e+00 : bf16
    %6 = vector.broadcast %cst : bf16 to vector<1x128xbf16>
    %c0_3 = arith.constant 0 : index
    %c0_4 = arith.constant 0 : index
    %7 = vector.load %arg13[%c0_3, %c0_4] : memref<1x32xf32, #tpu.memory_space<vmem>>, vector<1x32xf32>
    %cst_5 = arith.constant dense<0.000000e+00> : vector<1x32xf32>
    %8 = tpu.matmul %6, %5, %cst_5 {dimension_numbers = #tpu.dot_dimension_numbers<[1], [1], [0], [0], [0, 0, 1, 0], [], []>} : vector<1x128xbf16>, vector<32x128xbf16>, vector<1x32xf32> -> vector<1x32xf32>
    %9 = arith.addf %7, %8 : vector<1x32xf32>
    %c0_6 = arith.constant 0 : index
    %c0_7 = arith.constant 0 : index
    %10 = vector.load %arg13[%c0_6, %c0_7] : memref<1x32xf32, #tpu.memory_space<vmem>>, vector<1x32xf32>
    tpu.vector_store %arg13[%c0_6, %c0_7], %9 {strides = array<i32>} : memref<1x32xf32, #tpu.memory_space<vmem>>, vector<1x32xf32>,
    %c0_8 = arith.constant 0 : index
    %c0_9 = arith.constant 0 : index
    %11 = vector.load %arg3[%c0_8, %c0_9] : memref<32x32xbf16, #tpu.memory_space<vmem>>, vector<32x32xbf16>
    %cst_10 = arith.constant dense<0.000000e+00> : vector<32x128xf32>
    %12 = tpu.matmul %11, %5, %cst_10 {dimension_numbers = #tpu.dot_dimension_numbers<[1], [0], [0], [1], [0, 0, 1, 1], [], []>} : vector<32x32xbf16>, vector<32x128xbf16>, vector<32x128xf32> -> vector<32x128xf32>
    %13 = arith.mulf %12, %12 : vector<32x128xf32>
    %cst_11 = arith.constant dense<0.000000e+00> : vector<128xf32>
    %14 = vector.multi_reduction <add>, %13, %cst_11 [0] : vector<32x128xf32> to vector<128xf32>
    %15 = vector.shape_cast %14 : vector<128xf32> to vector<1x128xf32>
    %cst_12 = arith.constant 1.000000e-24 : f32
    %16 = vector.broadcast %cst_12 : f32 to vector<1x128xf32>
    %17 = arith.maximumf %15, %16 : vector<1x128xf32>
    %18 = math.rsqrt %17 : vector<1x128xf32>
    %cst_13 = arith.constant 1.000000e+00 : f32
    %19 = vector.broadcast %cst_13 : f32 to vector<1x128xf32>
    %20 = arith.mulf %18, %19 : vector<1x128xf32>
    %21 = vector.broadcast %20 : vector<1x128xf32> to vector<32x128xf32>
    %22 = arith.mulf %12, %21 : vector<32x128xf32>
    %c0_14 = arith.constant 0 : index
    %c0_15 = arith.constant 0 : index
    %23 = vector.load %arg10[%c0_14, %c0_15] : memref<32x1xf32, #tpu.memory_space<vmem>>, vector<32x1xf32>
    %cst_16 = arith.constant dense<0xFF800000> : vector<32xf32>
    %24 = vector.multi_reduction <maximumf>, %22, %cst_16 [1] : vector<32x128xf32> to vector<32xf32>
    %25 = vector.shape_cast %24 : vector<32xf32> to vector<32x1xf32>
    %26 = arith.maximumf %23, %25 : vector<32x1xf32>
    %27 = arith.subf %23, %26 : vector<32x1xf32>
    %28 = math.exp %27 : vector<32x1xf32>
    %29 = vector.broadcast %26 : vector<32x1xf32> to vector<32x128xf32>
    %30 = arith.subf %22, %29 : vector<32x128xf32>
    %31 = math.exp %30 : vector<32x128xf32>
    %c0_17 = arith.constant 0 : index
    %c0_18 = arith.constant 0 : index
    %32 = vector.load %arg11[%c0_17, %c0_18] : memref<32x1xf32, #tpu.memory_space<vmem>>, vector<32x1xf32>
    %33 = arith.mulf %28, %32 : vector<32x1xf32>
    %cst_19 = arith.constant dense<0.000000e+00> : vector<32xf32>
    %34 = vector.multi_reduction <add>, %31, %cst_19 [1] : vector<32x128xf32> to vector<32xf32>
    %35 = vector.shape_cast %34 : vector<32xf32> to vector<32x1xf32>
    %36 = arith.addf %33, %35 : vector<32x1xf32>
    %c0_20 = arith.constant 0 : index
    %c0_21 = arith.constant 0 : index
    %37 = vector.load %arg11[%c0_20, %c0_21] : memref<32x1xf32, #tpu.memory_space<vmem>>, vector<32x1xf32>
    tpu.vector_store %arg11[%c0_20, %c0_21], %36 {strides = array<i32>} : memref<32x1xf32, #tpu.memory_space<vmem>>, vector<32x1xf32>,
    %c0_22 = arith.constant 0 : index
    %c0_23 = arith.constant 0 : index
    %38 = vector.load %arg12[%c0_22, %c0_23] : memref<32x32xf32, #tpu.memory_space<vmem>>, vector<32x32xf32>
    %39 = vector.broadcast %28 : vector<32x1xf32> to vector<32x32xf32>
    %40 = arith.mulf %39, %38 : vector<32x32xf32>
    %41 = arith.truncf %31 : vector<32x128xf32> to vector<32x128xbf16>
    %cst_24 = arith.constant dense<0.000000e+00> : vector<32x32xf32>
    %42 = tpu.matmul %41, %5, %cst_24 {dimension_numbers = #tpu.dot_dimension_numbers<[1], [1], [0], [0], [0, 0, 1, 0], [], []>} : vector<32x128xbf16>, vector<32x128xbf16>, vector<32x32xf32> -> vector<32x32xf32>
    %43 = arith.addf %40, %42 : vector<32x32xf32>
    %c0_25 = arith.constant 0 : index
    %c0_26 = arith.constant 0 : index
    %44 = vector.load %arg12[%c0_25, %c0_26] : memref<32x32xf32, #tpu.memory_space<vmem>>, vector<32x32xf32>
    tpu.vector_store %arg12[%c0_25, %c0_26], %43 {strides = array<i32>} : memref<32x32xf32, #tpu.memory_space<vmem>>, vector<32x32xf32>,
    %c0_27 = arith.constant 0 : index
    %c0_28 = arith.constant 0 : index
    %45 = vector.load %arg10[%c0_27, %c0_28] : memref<32x1xf32, #tpu.memory_space<vmem>>, vector<32x1xf32>
    tpu.vector_store %arg10[%c0_27, %c0_28], %26 {strides = array<i32>} : memref<32x1xf32, #tpu.memory_space<vmem>>, vector<32x1xf32>,
    %c1_i32 = arith.constant 1 : i32
    %46 = arith.cmpi eq, %arg1, %c1_i32 : i32
    %47 = arith.extui %46 : i1 to i32
    %c0_i32_29 = arith.constant 0 : i32
    %48 = arith.cmpi ne, %47, %c0_i32_29 : i32
    scf.if %48 {
      %c0_30 = arith.constant 0 : index
      %c0_31 = arith.constant 0 : index
      %49 = vector.load %arg11[%c0_30, %c0_31] : memref<32x1xf32, #tpu.memory_space<vmem>>, vector<32x1xf32>
      %50 = tpu.reciprocal %49 {approx = true} : vector<32x1xf32> -> vector<32x1xf32>
      %c0_32 = arith.constant 0 : index
      %c0_33 = arith.constant 0 : index
      %51 = vector.load %arg12[%c0_32, %c0_33] : memref<32x32xf32, #tpu.memory_space<vmem>>, vector<32x32xf32>
      %52 = vector.broadcast %50 : vector<32x1xf32> to vector<32x32xf32>
      %53 = arith.mulf %51, %52 : vector<32x32xf32>
      %c0_34 = arith.constant 0 : index
      %c0_35 = arith.constant 0 : index
      %54 = vector.load %arg6[%c0_34, %c0_35] : memref<32x32xf32, #tpu.memory_space<vmem>>, vector<32x32xf32>
      %55 = arith.mulf %53, %54 : vector<32x32xf32>
      %c0_36 = arith.constant 0 : index
      %c0_37 = arith.constant 0 : index
      %56 = vector.load %arg7[%c0_36, %c0_37] : memref<4x32xbf16, #tpu.memory_space<vmem>>, vector<4x32xbf16>
      %57 = arith.truncf %55 : vector<32x32xf32> to vector<32x32xbf16>
      %cst_38 = arith.constant dense<0.000000e+00> : vector<4x32xf32>
      %58 = tpu.matmul %56, %57, %cst_38 {dimension_numbers = #tpu.dot_dimension_numbers<[1], [0], [0], [1], [0, 0, 1, 1], [], []>} : vector<4x32xbf16>, vector<32x32xbf16>, vector<4x32xf32> -> vector<4x32xf32>
      %59 = arith.truncf %58 : vector<4x32xf32> to vector<4x32xbf16>
      %c0_39 = arith.constant 0 : index
      %c0_40 = arith.constant 0 : index
      %60 = vector.load %arg5[%c0_39, %c0_40] : memref<32x32xbf16, #tpu.memory_space<vmem>>, vector<32x32xbf16>
      %cst_41 = arith.constant dense<0.000000e+00> : vector<4x32xf32>
      %61 = tpu.matmul %59, %60, %cst_41 {dimension_numbers = #tpu.dot_dimension_numbers<[1], [1], [0], [0], [0, 0, 1, 0], [], []>} : vector<4x32xbf16>, vector<32x32xbf16>, vector<4x32xf32> -> vector<4x32xf32>
      %c0_42 = arith.constant 0 : index
      %c0_43 = arith.constant 0 : index
      %c0_44 = arith.constant 0 : index
      %62 = vector.load %arg9[%c0_42, %c0_43, %c0_44] : memref<1x4x32xf32, #tpu.memory_space<vmem>>, vector<1x4x32xf32>
      %63 = vector.shape_cast %62 : vector<1x4x32xf32> to vector<4x32xf32>
      %64 = vector.shape_cast %61 : vector<4x32xf32> to vector<1x4x32xf32>
      tpu.vector_store %arg9[%c0_42, %c0_43, %c0_44], %64 {strides = array<i32>} : memref<1x4x32xf32, #tpu.memory_space<vmem>>, vector<1x4x32xf32>,
      %c0_45 = arith.constant 0 : index
      %c0_46 = arith.constant 0 : index
      %65 = vector.load %arg13[%c0_45, %c0_46] : memref<1x32xf32, #tpu.memory_space<vmem>>, vector<1x32xf32>
      %cst_47 = arith.constant 3.906250e-03 : f32
      %66 = vector.broadcast %cst_47 : f32 to vector<1x32xf32>
      %67 = arith.mulf %65, %66 : vector<1x32xf32>
      %68 = arith.truncf %67 : vector<1x32xf32> to vector<1x32xbf16>
      %c0_48 = arith.constant 0 : index
      %c0_49 = arith.constant 0 : index
      %69 = vector.load %arg4[%c0_48, %c0_49] : memref<32x32xbf16, #tpu.memory_space<vmem>>, vector<32x32xbf16>
      %cst_50 = arith.constant dense<0.000000e+00> : vector<1x32xf32>
      %70 = tpu.matmul %68, %69, %cst_50 {dimension_numbers = #tpu.dot_dimension_numbers<[1], [1], [0], [0], [0, 0, 1, 0], [], []>} : vector<1x32xbf16>, vector<32x32xbf16>, vector<1x32xf32> -> vector<1x32xf32>
      %c0_51 = arith.constant 0 : index
      %c0_52 = arith.constant 0 : index
      %c0_53 = arith.constant 0 : index
      %71 = vector.load %arg8[%c0_51, %c0_52, %c0_53] : memref<1x1x32xf32, #tpu.memory_space<vmem>>, vector<1x1x32xf32>
      %72 = vector.shape_cast %71 : vector<1x1x32xf32> to vector<1x32xf32>
      %73 = vector.shape_cast %70 : vector<1x32xf32> to vector<1x1x32xf32>
      tpu.vector_store %arg8[%c0_51, %c0_52, %c0_53], %73 {strides = array<i32>} : memref<1x1x32xf32, #tpu.memory_space<vmem>>, vector<1x1x32xf32>,
    } else {
    }
    return
  }
  func.func @transform_0(%arg0: i32, %arg1: i32) -> (i32, i32, i32) {
    %c0_i32 = arith.constant 0 : i32
    %c0_i32_0 = arith.constant 0 : i32
    return %arg0, %c0_i32, %arg1 : i32, i32, i32
  }
  func.func @transform_1(%arg0: i32, %arg1: i32) -> (i32, i32) {
    %c0_i32 = arith.constant 0 : i32
    %c0_i32_0 = arith.constant 0 : i32
    %c0_i32_1 = arith.constant 0 : i32
    return %c0_i32, %c0_i32_0 : i32, i32
  }
  func.func @transform_2(%arg0: i32, %arg1: i32) -> (i32, i32) {
    %c0_i32 = arith.constant 0 : i32
    %c0_i32_0 = arith.constant 0 : i32
    %c0_i32_1 = arith.constant 0 : i32
    return %c0_i32, %c0_i32_0 : i32, i32
  }
  func.func @transform_3(%arg0: i32, %arg1: i32) -> (i32, i32) {
    %c0_i32 = arith.constant 0 : i32
    %c0_i32_0 = arith.constant 0 : i32
    %c0_i32_1 = arith.constant 0 : i32
    return %c0_i32, %c0_i32_0 : i32, i32
  }
  func.func @transform_4(%arg0: i32, %arg1: i32) -> (i32, i32) {
    %c0_i32 = arith.constant 0 : i32
    %c0_i32_0 = arith.constant 0 : i32
    %c0_i32_1 = arith.constant 0 : i32
    return %c0_i32, %c0_i32_0 : i32, i32
  }
  func.func @transform_5(%arg0: i32, %arg1: i32) -> (i32, i32) {
    %c0_i32 = arith.constant 0 : i32
    %c0_i32_0 = arith.constant 0 : i32
    %c0_i32_1 = arith.constant 0 : i32
    return %c0_i32, %c0_i32_0 : i32, i32
  }
  func.func @transform_6(%arg0: i32, %arg1: i32) -> (i32, i32, i32) {
    %c0_i32 = arith.constant 0 : i32
    %c0_i32_0 = arith.constant 0 : i32
    %c0_i32_1 = arith.constant 0 : i32
    return %arg0, %c0_i32, %c0_i32_0 : i32, i32, i32
  }
  func.func @transform_7(%arg0: i32, %arg1: i32) -> (i32, i32, i32) {
    %c0_i32 = arith.constant 0 : i32
    %c0_i32_0 = arith.constant 0 : i32
    %c0_i32_1 = arith.constant 0 : i32
    return %arg0, %c0_i32, %c0_i32_0 : i32, i32, i32
  }
}

</mosaic_0001>

<llo_original>
// kernel: tpu_custom_call.1
$region0: #{tpu_custom_call.1}
  #allocation0 [shape = 'u32[]', space=smem, size = 0x4, offset = 0x4, fixed_abs, tag = 'smem constant byte address 0x4 - core index']
  #allocation1 [shape = 'u32[72,128]{1,0:T(1,128)}', space=vmem, size = 0x9000, scoped, tag = 'internal scratch']
  #allocation2 [shape = 'f32[32,1]{1,0:T(8,128)}', space=vmem, size = 0x4000, scoped, tag = 'scratch operand']
  #allocation3 [shape = 'f32[32,1]{1,0:T(8,128)}', space=vmem, size = 0x4000, scoped, tag = 'scratch operand']
  #allocation4 [shape = 'f32[32,32]{1,0:T(8,128)}', space=vmem, size = 0x4000, scoped, tag = 'scratch operand']
  #allocation5 [shape = 'f32[1,32]{1,0:T(1,128)}', space=vmem, size = 0x200, scoped, tag = 'scratch operand']
  %s0 = inlined_call_operand.hbm [shape: f32[2,32,256], index: 0, kind: input, shape index: {}]
  %s1 = inlined_call_operand.hbm [shape: bf16[32,32], index: 1, kind: input, shape index: {}]
  %s2 = inlined_call_operand.hbm [shape: bf16[32,32], index: 2, kind: input, shape index: {}]
  %s3 = inlined_call_operand.hbm [shape: bf16[32,32], index: 3, kind: input, shape index: {}]
  %s4 = inlined_call_operand.hbm [shape: f32[32,32], index: 4, kind: input, shape index: {}]
  %s5 = inlined_call_operand.vmem [shape: bf16[4,32], index: 5, kind: input, shape index: {}]
  %s6 = inlined_call_operand.hbm [shape: f32[2,1,32], index: 6, kind: output, shape index: {0}]
  %s7 = inlined_call_operand.hbm [shape: f32[2,4,32], index: 7, kind: output, shape index: {1}]
  %8 = xla_tuple %s6, %s7
  %s9 = sld [smem:[#allocation0]]
  $region93: #{tpu_custom_call.1} parent=0
    _
  %s11 = ssub.s32 1, %s9
  %s12 = scalar_select 0, %s11, %s9
  $region1: #{tpu_custom_call.1} parent=0
    #allocation6 [shape = 'u8[32768]{0}', space=vmem, size = 0x8000, scoped, tag = 'input window, operand 0']
    #allocation7 [shape = 's32[2]{0}', space=sflag, size = 0x8, scoped, tag = 'scoped memory for tpu_custom_call.1']
    #allocation8 [shape = 's32[2]{0}', space=sflag, size = 0x8, scoped, tag = 'scoped memory for tpu_custom_call.1']
    #allocation9 [shape = 'u8[8192]{0}', space=vmem, size = 0x2000, scoped, tag = 'input window, operand 1, single buffered']
    #allocation10 [shape = 's32[1]{0}', space=sflag, size = 0x4, scoped, tag = 'scoped memory for tpu_custom_call.1']
    #allocation11 [shape = 'u8[8192]{0}', space=vmem, size = 0x2000, scoped, tag = 'input window, operand 2, single buffered']
    #allocation12 [shape = 'u8[8192]{0}', space=vmem, size = 0x2000, scoped, tag = 'input window, operand 3, single buffered']
    #allocation13 [shape = 's32[1]{0}', space=sflag, size = 0x4, scoped, tag = 'scoped memory for tpu_custom_call.1']
    #allocation14 [shape = 'u8[16384]{0}', space=vmem, size = 0x4000, scoped, tag = 'input window, operand 4, single buffered']
    #allocation15 [shape = 'u8[1024]{0}', space=vmem, size = 0x400, scoped, tag = 'output window, operand 0']
    #allocation16 [shape = 'u8[4096]{0}', space=vmem, size = 0x1000, scoped, tag = 'output window, operand 1']
    #allocation17 [shape = 's32[2]{0}', space=sflag, size = 0x8, scoped, tag = 'scoped memory for tpu_custom_call.1']
    %13 = vsyncpa [#allocation7], 0
    %s14 = scalar_lea.sflag [#allocation7], 1
    %15 = vsyncpa %s14, 0
    %16 = vsyncpa [#allocation10], 0
    %17 = vsyncpa [#allocation13], 0
    %18 = vsyncpa [#allocation8], 0
    %s19 = scalar_lea.sflag [#allocation8], 1
    %20 = vsyncpa %s19, 0
    %21 = vsyncpa [#allocation17], 0
    %s22 = scalar_lea.sflag [#allocation17], 1
    %23 = vsyncpa %s22, 0
    loop: start=0, step=1, limit=6
    $region2: #{tpu_custom_call.1} parent=1 // loop_pre_header
      _
    $region3: #{tpu_custom_call.1} parent=1 // loop_header
      %s25 = sphi 0, %s29
      %p26 = scmp.ge.s32.totalorder %s25, 6
      %s32 = sphi 0, %s44
      %s33 = sphi 0, %s40
      %s34 = sphi 0, %s32
      %s35 = sphi 0, %s33
      %s36 = sphi 0, %s34
      %s37 = sphi 0, %s35
      %s49 = sphi 0, %s51
      %s52 = sphi 0, %s49
      %s53 = sphi 0, %s52
      %s69 = sphi 0, %s53
      %s73 = sphi 0, %s73
      %s75 = sphi 0, %s73
      %s76 = sphi 0, %s75
      %s90 = sphi 0, %s76
      %s94 = sphi 0, %s94
      %s96 = sphi 0, %s94
      %s97 = sphi 0, %s96
      %s111 = sphi 0, %s97
      %s115 = sphi 0, %s115
      %s117 = sphi 0, %s115
      %s118 = sphi 0, %s117
      %s132 = sphi 0, %s118
      %s136 = sphi 0, %s136
      %s138 = sphi 0, %s136
      %s139 = sphi 0, %s138
      %s153 = sphi 0, %s139
      %s157 = sphi 0, %s157
      %s159 = sphi 0, %s157
      %s160 = sphi 0, %s159
      %s174 = sphi 0, %s160
      %s180 = sphi 0, %s182
      %s183 = sphi 0, %s180
      %s184 = sphi 0, %s183
      %s200 = sphi 0, %s184
      %s206 = sphi 0, %s208
      %s209 = sphi 0, %s206
      %s210 = sphi 0, %s209
      %s226 = sphi 0, %s210
    $region4: #{tpu_custom_call.1} parent=1 // loop_header_branch
      %28 = sbr.rel (%p26) target = $region8
    $region5: #{tpu_custom_call.1} parent=1 // loop_body
      %s30 = ssub.s32 %s25, 1
      %s31 = ssub.s32 %s25, 2
      %s38 = sadd.s32 1, %s33
      %p39 = scmp.ge.s32.totalorder %s38, 2
      %s40 = scalar_select %p39, 0, %s38
      %s41 = sadd.s32 1, %s32
      %s42 = scalar_select %p39, %s41, %s32
      %p43 = scmp.ge.s32.totalorder %s42, 2
      %s44 = scalar_select %p43, 0, %s42
      %s45 = ssub.s32 %s32, %s44
      %s46 = ssub.s32 %s33, %s40
      %s47 = sor.u32 %s45, %s46
      %p48 = scmp.eq.s32.totalorder %s47, 0
      %s50 = sadd.s32 %s49, 1
      %s51 = scalar_select %p48, %s49, %s50
      %p54 = pneg %p48
      %p55 = scmp.eq.s32.totalorder %s25, 3
      %p56 = por %p54, %p55
      %p57 = scmp.ne.s32.totalorder %s49, %s52
      %p58 = scmp.eq.s32.totalorder %s25, 0
      %p59 = por %p57, %p58
      %p60 = scmp.ne.s32.totalorder %s49, %s52
      %p61 = scmp.eq.s32.totalorder %s30, 3
      %p62 = por %p60, %p61
      %p63 = scmp.ne.s32.totalorder %s52, %s53
      %p64 = scmp.eq.s32.totalorder %s30, 0
      %p65 = por %p63, %p64
      %p66 = scmp.ne.s32.totalorder %s52, %s53
      %p67 = scmp.eq.s32.totalorder %s31, 3
      %p68 = por %p66, %p67
      %p70 = scmp.ne.s32.totalorder %s53, %s69
      %p71 = scmp.eq.s32.totalorder %s31, 0
      %p72 = por %p70, %p71
      %s74 = sadd.s32 %s73, 1
      %p77 = scmp.eq.s32.totalorder %s25, 3
      %p78 = scmp.ne.s32.totalorder %s73, %s75
      %p79 = scmp.eq.s32.totalorder %s25, 0
      %p80 = por %p78, %p79
      %p81 = scmp.ne.s32.totalorder %s73, %s75
      %p82 = scmp.eq.s32.totalorder %s30, 3
      %p83 = por %p81, %p82
      %p84 = scmp.ne.s32.totalorder %s75, %s76
      %p85 = scmp.eq.s32.totalorder %s30, 0
      %p86 = por %p84, %p85
      %p87 = scmp.ne.s32.totalorder %s75, %s76
      %p88 = scmp.eq.s32.totalorder %s31, 3
      %p89 = por %p87, %p88
      %p91 = scmp.ne.s32.totalorder %s76, %s90
      %p92 = scmp.eq.s32.totalorder %s31, 0
      %p93 = por %p91, %p92
      %s95 = sadd.s32 %s94, 1
      %p98 = scmp.eq.s32.totalorder %s25, 3
      %p99 = scmp.ne.s32.totalorder %s94, %s96
      %p100 = scmp.eq.s32.totalorder %s25, 0
      %p101 = por %p99, %p100
      %p102 = scmp.ne.s32.totalorder %s94, %s96
      %p103 = scmp.eq.s32.totalorder %s30, 3
      %p104 = por %p102, %p103
      %p105 = scmp.ne.s32.totalorder %s96, %s97
      %p106 = scmp.eq.s32.totalorder %s30, 0
      %p107 = por %p105, %p106
      %p108 = scmp.ne.s32.totalorder %s96, %s97
      %p109 = scmp.eq.s32.totalorder %s31, 3
      %p110 = por %p108, %p109
      %p112 = scmp.ne.s32.totalorder %s97, %s111
      %p113 = scmp.eq.s32.totalorder %s31, 0
      %p114 = por %p112, %p113
      %s116 = sadd.s32 %s115, 1
      %p119 = scmp.eq.s32.totalorder %s25, 3
      %p120 = scmp.ne.s32.totalorder %s115, %s117
      %p121 = scmp.eq.s32.totalorder %s25, 0
      %p122 = por %p120, %p121
      %p123 = scmp.ne.s32.totalorder %s115, %s117
      %p124 = scmp.eq.s32.totalorder %s30, 3
      %p125 = por %p123, %p124
      %p126 = scmp.ne.s32.totalorder %s117, %s118
      %p127 = scmp.eq.s32.totalorder %s30, 0
      %p128 = por %p126, %p127
      %p129 = scmp.ne.s32.totalorder %s117, %s118
      %p130 = scmp.eq.s32.totalorder %s31, 3
      %p131 = por %p129, %p130
      %p133 = scmp.ne.s32.totalorder %s118, %s132
      %p134 = scmp.eq.s32.totalorder %s31, 0
      %p135 = por %p133, %p134
      %s137 = sadd.s32 %s136, 1
      %p140 = scmp.eq.s32.totalorder %s25, 3
      %p141 = scmp.ne.s32.totalorder %s136, %s138
      %p142 = scmp.eq.s32.totalorder %s25, 0
      %p143 = por %p141, %p142
      %p144 = scmp.ne.s32.totalorder %s136, %s138
      %p145 = scmp.eq.s32.totalorder %s30, 3
      %p146 = por %p144, %p145
      %p147 = scmp.ne.s32.totalorder %s138, %s139
      %p148 = scmp.eq.s32.totalorder %s30, 0
      %p149 = por %p147, %p148
      %p150 = scmp.ne.s32.totalorder %s138, %s139
      %p151 = scmp.eq.s32.totalorder %s31, 3
      %p152 = por %p150, %p151
      %p154 = scmp.ne.s32.totalorder %s139, %s153
      %p155 = scmp.eq.s32.totalorder %s31, 0
      %p156 = por %p154, %p155
      %s158 = sadd.s32 %s157, 1
      %p161 = scmp.eq.s32.totalorder %s25, 3
      %p162 = scmp.ne.s32.totalorder %s157, %s159
      %p163 = scmp.eq.s32.totalorder %s25, 0
      %p164 = por %p162, %p163
      %p165 = scmp.ne.s32.totalorder %s157, %s159
      %p166 = scmp.eq.s32.totalorder %s30, 3
      %p167 = por %p165, %p166
      %p168 = scmp.ne.s32.totalorder %s159, %s160
      %p169 = scmp.eq.s32.totalorder %s30, 0
      %p170 = por %p168, %p169
      %p171 = scmp.ne.s32.totalorder %s159, %s160
      %p172 = scmp.eq.s32.totalorder %s31, 3
      %p173 = por %p171, %p172
      %p175 = scmp.ne.s32.totalorder %s160, %s174
      %p176 = scmp.eq.s32.totalorder %s31, 0
      %p177 = por %p175, %p176
      %s178 = ssub.s32 %s32, %s44
      %p179 = scmp.eq.s32.totalorder %s178, 0
      %s181 = sadd.s32 %s180, 1
      %s182 = scalar_select %p179, %s180, %s181
      %p185 = pneg %p179
      %p186 = scmp.eq.s32.totalorder %s25, 3
      %p187 = por %p185, %p186
      %p188 = scmp.ne.s32.totalorder %s180, %s183
      %p189 = scmp.eq.s32.totalorder %s25, 0
      %p190 = por %p188, %p189
      %p191 = scmp.ne.s32.totalorder %s180, %s183
      %p192 = scmp.eq.s32.totalorder %s30, 3
      %p193 = por %p191, %p192
      %p194 = scmp.ne.s32.totalorder %s183, %s184
      %p195 = scmp.eq.s32.totalorder %s30, 0
      %p196 = por %p194, %p195
      %p197 = scmp.ne.s32.totalorder %s183, %s184
      %p198 = scmp.eq.s32.totalorder %s31, 3
      %p199 = por %p197, %p198
      %p201 = scmp.ne.s32.totalorder %s184, %s200
      %p202 = scmp.eq.s32.totalorder %s31, 0
      %p203 = por %p201, %p202
      %s204 = ssub.s32 %s32, %s44
      %p205 = scmp.eq.s32.totalorder %s204, 0
      %s207 = sadd.s32 %s206, 1
      %s208 = scalar_select %p205, %s206, %s207
      %p211 = pneg %p205
      %p212 = scmp.eq.s32.totalorder %s25, 3
      %p213 = por %p211, %p212
      %p214 = scmp.ne.s32.totalorder %s206, %s209
      %p215 = scmp.eq.s32.totalorder %s25, 0
      %p216 = por %p214, %p215
      %p217 = scmp.ne.s32.totalorder %s206, %s209
      %p218 = scmp.eq.s32.totalorder %s30, 3
      %p219 = por %p217, %p218
      %p220 = scmp.ne.s32.totalorder %s209, %s210
      %p221 = scmp.eq.s32.totalorder %s30, 0
      %p222 = por %p220, %p221
      %p223 = scmp.ne.s32.totalorder %s209, %s210
      %p224 = scmp.eq.s32.totalorder %s31, 3
      %p225 = por %p223, %p224
      %p227 = scmp.ne.s32.totalorder %s210, %s226
      %p228 = scmp.eq.s32.totalorder %s31, 0
      %p229 = por %p227, %p228
      %p230 = scmp.le.s32.totalorder 1, %s25
      %p231 = scmp.lt.s32.totalorder %s25, 5
      %p232 = pnand %p230, %p231
      %p233 = pneg %p232
      // Predicated region
      $region9: #{tpu_custom_call.1} parent=5 // pred_check
        _
      $region10: #{tpu_custom_call.1} parent=5 // pred_check_branch
        %235 = sbr.rel (%p232) target = $region12
      $region11: #{tpu_custom_call.1} parent=5 // pred_region
        %s236 = ssub.s32 %s25, 1
        // Predicated region
        $region13: #{tpu_custom_call.1} parent=11 // pred_check
          %p237 = pneg %p86
        $region14: #{tpu_custom_call.1} parent=11 // pred_check_branch
          %239 = sbr.rel (%p237) target = $region16
        $region15: #{tpu_custom_call.1} parent=11 // pred_region
          %241 = vsyncadd [#allocation10], 0
          %s242 = sshll.u32 %s1, 4
          %s243 = int_to_ptr.hbm [resolvable:$true] %s242
          %s244 = sshll.u32 [#allocation9], 4
          %s245 = int_to_ptr.vmem [resolvable:$true] %s244
          %250 = dma.hbm_to_vmem [thread:$0]  %s243, 256, %s245, [#allocation10], 64, 64, 4
        $region16: #{tpu_custom_call.1} parent=11 // pred_fallthru
          _
        // Predicated region
        $region17: #{tpu_custom_call.1} parent=11 // pred_check
          %p251 = pneg %p107
        $region18: #{tpu_custom_call.1} parent=11 // pred_check_branch
          %253 = sbr.rel (%p251) target = $region20
        $region19: #{tpu_custom_call.1} parent=11 // pred_region
          %255 = vsyncadd [#allocation10], 0
          %s256 = sshll.u32 %s2, 4
          %s257 = int_to_ptr.hbm [resolvable:$true] %s256
          %s258 = sshll.u32 [#allocation11], 4
          %s259 = int_to_ptr.vmem [resolvable:$true] %s258
          %264 = dma.hbm_to_vmem [thread:$0]  %s257, 256, %s259, [#allocation10], 64, 64, 4
        $region20: #{tpu_custom_call.1} parent=11 // pred_fallthru
          _
        // Predicated region
        $region21: #{tpu_custom_call.1} parent=11 // pred_check
          %p265 = pneg %p128
        $region22: #{tpu_custom_call.1} parent=11 // pred_check_branch
          %267 = sbr.rel (%p265) target = $region24
        $region23: #{tpu_custom_call.1} parent=11 // pred_region
          %269 = vsyncadd [#allocation13], 0
          %s270 = sshll.u32 %s3, 4
          %s271 = int_to_ptr.hbm [resolvable:$true] %s270
          %s272 = sshll.u32 [#allocation12], 4
          %s273 = int_to_ptr.vmem [resolvable:$true] %s272
          %278 = dma.hbm_to_vmem [thread:$0]  %s271, 256, %s273, [#allocation13], 64, 64, 4
        $region24: #{tpu_custom_call.1} parent=11 // pred_fallthru
          _
        // Predicated region
        $region25: #{tpu_custom_call.1} parent=11 // pred_check
          %p279 = pneg %p149
        $region26: #{tpu_custom_call.1} parent=11 // pred_check_branch
          %281 = sbr.rel (%p279) target = $region28
        $region27: #{tpu_custom_call.1} parent=11 // pred_region
          %283 = vsyncadd [#allocation13], 0
          %s284 = sshll.u32 %s4, 4
          %s285 = int_to_ptr.hbm [resolvable:$true] %s284
          %s286 = sshll.u32 [#allocation14], 4
          %s287 = int_to_ptr.vmem [resolvable:$true] %s286
          %292 = dma.hbm_to_vmem [thread:$0]  %s285, 512, %s287, [#allocation13], 128, 128, 8
        $region28: #{tpu_custom_call.1} parent=11 // pred_fallthru
          _
        // Predicated region
        $region29: #{tpu_custom_call.1} parent=11 // pred_check
          %p293 = pneg %p170
        $region30: #{tpu_custom_call.1} parent=11 // pred_check_branch
          %295 = sbr.rel (%p293) target = $region32
        $region31: #{tpu_custom_call.1} parent=11 // pred_region
          _
        $region32: #{tpu_custom_call.1} parent=11 // pred_fallthru
          _
      $region12: #{tpu_custom_call.1} parent=5 // pred_fallthru
        _
      %p296 = scmp.lt.s32.totalorder %s25, 4
      // Predicated region
      $region33: #{tpu_custom_call.1} parent=5 // pred_check
        %p297 = pneg %p296
      $region34: #{tpu_custom_call.1} parent=5 // pred_check_branch
        %299 = sbr.rel (%p297) target = $region36
      $region35: #{tpu_custom_call.1} parent=5 // pred_region
        // Predicated region
        $region37: #{tpu_custom_call.1} parent=35 // pred_check
          %p300 = pneg %p59
        $region38: #{tpu_custom_call.1} parent=35 // pred_check_branch
          %302 = sbr.rel (%p300) target = $region40
        $region39: #{tpu_custom_call.1} parent=35 // pred_region
          %s303 = sand.u32 %s49, 1
          %s304 = scalar_lea.sflag [#allocation7], %s303
          %s305 = sand.u32 %s49, 1
          %s306 = smul.addr %s305, 32
          %s307 = scalar_lea.vmem [#allocation6], %s306
          %309 = vsyncadd %s304, 0
          %s310 = smul.addr %s32, 8
          %s311 = sadd.s32 %s33, %s310
          %s312 = smul.addr %s311, 8
          %s313 = scalar_lea.hbm %s0, %s312
          %s314 = sshll.u32 %s313, 4
          %s315 = int_to_ptr.hbm [resolvable:$true] %s314
          %s316 = sshll.u32 %s307, 4
          %s317 = int_to_ptr.vmem [resolvable:$true] %s316
          %322 = dma.hbm_to_vmem [thread:$0]  %s315, 512, %s317, %s304, 256, 128, 8
        $region40: #{tpu_custom_call.1} parent=35 // pred_fallthru
          _
      $region36: #{tpu_custom_call.1} parent=5 // pred_fallthru
        _
      %p323 = scmp.le.s32.totalorder 1, %s25
      %p324 = scmp.lt.s32.totalorder %s25, 5
      %p325 = pnand %p323, %p324
      %p326 = pneg %p325
      // Predicated region
      $region41: #{tpu_custom_call.1} parent=5 // pred_check
        _
      $region42: #{tpu_custom_call.1} parent=5 // pred_check_branch
        %328 = sbr.rel (%p325) target = $region44
      $region43: #{tpu_custom_call.1} parent=5 // pred_region
        %s329 = ssub.s32 %s25, 1
        %s330 = sand.u32 %s52, 1
        %s331 = scalar_lea.sflag [#allocation7], %s330
        %s332 = sand.u32 %s52, 1
        %s333 = smul.addr %s332, 32
        %s334 = scalar_lea.vmem [#allocation6], %s333
        // Predicated region
        $region45: #{tpu_custom_call.1} parent=43 // pred_check
          %p335 = pneg %p65
        $region46: #{tpu_custom_call.1} parent=43 // pred_check_branch
          %337 = sbr.rel (%p335) target = $region48
        $region47: #{tpu_custom_call.1} parent=43 // pred_region
          %339 = dma.done %s331, 512
        $region48: #{tpu_custom_call.1} parent=43 // pred_fallthru
          _
        // Predicated region
        $region49: #{tpu_custom_call.1} parent=43 // pred_check
          %p340 = pneg %p86
        $region50: #{tpu_custom_call.1} parent=43 // pred_check_branch
          %342 = sbr.rel (%p340) target = $region52
        $region51: #{tpu_custom_call.1} parent=43 // pred_region
          %344 = dma.done [#allocation10], 256
        $region52: #{tpu_custom_call.1} parent=43 // pred_fallthru
          _
        // Predicated region
        $region53: #{tpu_custom_call.1} parent=43 // pred_check
          %p345 = pneg %p107
        $region54: #{tpu_custom_call.1} parent=43 // pred_check_branch
          %347 = sbr.rel (%p345) target = $region56
        $region55: #{tpu_custom_call.1} parent=43 // pred_region
          %349 = dma.done [#allocation10], 256
        $region56: #{tpu_custom_call.1} parent=43 // pred_fallthru
          _
        // Predicated region
        $region57: #{tpu_custom_call.1} parent=43 // pred_check
          %p350 = pneg %p128
        $region58: #{tpu_custom_call.1} parent=43 // pred_check_branch
          %352 = sbr.rel (%p350) target = $region60
        $region59: #{tpu_custom_call.1} parent=43 // pred_region
          %354 = dma.done [#allocation13], 256
        $region60: #{tpu_custom_call.1} parent=43 // pred_fallthru
          _
        // Predicated region
        $region61: #{tpu_custom_call.1} parent=43 // pred_check
          %p355 = pneg %p149
        $region62: #{tpu_custom_call.1} parent=43 // pred_check_branch
          %357 = sbr.rel (%p355) target = $region64
        $region63: #{tpu_custom_call.1} parent=43 // pred_region
          %359 = dma.done [#allocation13], 512
        $region64: #{tpu_custom_call.1} parent=43 // pred_fallthru
          _
        %s360 = sand.u32 %s52, 1
        %s361 = scalar_lea.sflag [#allocation7], %s360
        %s362 = sand.u32 %s52, 1
        %s363 = smul.addr %s362, 32
        %s364 = scalar_lea.vmem [#allocation6], %s363
        %p365 = pneg %p65
        %p366 = pneg %p62
        %p367 = pneg %p86
        %p368 = pneg %p83
        %p369 = pneg %p107
        %p370 = pneg %p104
        %p371 = pneg %p128
        %p372 = pneg %p125
        %p373 = pneg %p149
        %p374 = pneg %p146
        %p375 = pneg %p170
        %p376 = pneg %p167
        %p377 = pneg %p196
        %p378 = pneg %p193
        %s379 = sand.u32 %s183, 1
        %s380 = scalar_lea.sflag [#allocation8], %s379
        %s381 = sand.u32 %s183, 1
        %s382 = scalar_lea.vmem [#allocation15], %s381
        %p383 = pneg %p222
        %p384 = pneg %p219
        %s385 = sand.u32 %s209, 1
        %s386 = scalar_lea.sflag [#allocation17], %s385
        %s387 = sand.u32 %s209, 1
        %s388 = smul.addr %s387, 4
        %s389 = scalar_lea.vmem [#allocation16], %s388
        %p392 = scmp.eq.s32.totalorder %s35, 0
        // Predicated region
        $region65: #{tpu_custom_call.1} parent=43 // pred_check
          %p393 = pneg %p392
        $region66: #{tpu_custom_call.1} parent=43 // pred_check_branch
          %395 = sbr.rel (%p393) target = $region68
        $region67: #{tpu_custom_call.1} parent=43 // pred_region
          %vm396 = vcmask 7168
          %397 = vst.msk [vmem:[#allocation2] sm:$0xff] %vm396, -inf
          %398 = vst.msk [vmem:[#allocation2 + $0x8] sm:$0xff] %vm396, -inf
          %399 = vst.msk [vmem:[#allocation2 + $0x10] sm:$0xff] %vm396, -inf
          %400 = vst.msk [vmem:[#allocation2 + $0x18] sm:$0xff] %vm396, -inf
          %401 = vst.msk [vmem:[#allocation3] sm:$0xff] %vm396, 0.0
          %402 = vst.msk [vmem:[#allocation3 + $0x8] sm:$0xff] %vm396, 0.0
          %403 = vst.msk [vmem:[#allocation3 + $0x10] sm:$0xff] %vm396, 0.0
          %404 = vst.msk [vmem:[#allocation3 + $0x18] sm:$0xff] %vm396, 0.0
          %vm405 = vcmask 261120
          %406 = vst.msk [vmem:[#allocation4] sm:$0xff] %vm405, 0.0
          %407 = vst.msk [vmem:[#allocation4 + $0x8] sm:$0xff] %vm405, 0.0
          %408 = vst.msk [vmem:[#allocation4 + $0x10] sm:$0xff] %vm405, 0.0
          %409 = vst.msk [vmem:[#allocation4 + $0x18] sm:$0xff] %vm405, 0.0
          %vm410 = vcmask 253952
          %411 = vst.msk [vmem:[#allocation5] sm:$0x1] %vm410, 0.0
        $region68: #{tpu_custom_call.1} parent=43 // pred_fallthru
          _
        %v412 = vld [vmem:[%s334] sm:$0xff]
        %v413 = vld [vmem:[%s334 + $0x8] sm:$0xff]
        %v414 = vld [vmem:[%s334 + $0x10] sm:$0xff]
        %v415 = vld [vmem:[%s334 + $0x18] sm:$0xff]
        %v416 = vpack.c.bf16 %v413, %v412
        %v417 = vpack.c.bf16 %v415, %v414
        %v418 = vld [vmem:[#allocation5] sm:$0x1]
        %419 = vmatpush.bf16.xpose.msra.mxu0 0
        %420 = vmatpush.bf16.xpose.msra.mxu0 0
        %421 = vmatpush.bf16.xpose.msra.mxu0 0
        %422 = vmatpush.bf16.xpose.msra.mxu0 0
        %423 = vmatpush.bf16.xpose.msra.mxu0 0
        %424 = vmatpush.bf16.xpose.msra.mxu0 0
        %425 = vmatpush.bf16.xpose.msra.mxu0 %v417
        %426 = vmatpush.bf16.xpose.msra.mxu0 %v416
        %427 = vmatmul.bf16.gmra.mxu0 1065369472
        %v428 = vpop.f32.mrf.mxu0
        %v429 = vadd.f32 0.0, %v428
        %v430 = vpop.f32.mrf.mxu0
        %431 = vdwg.mxu0
        %v432 = vadd.f32 %v418, %v429
        %vm433 = vcmask 253952
        %434 = vst.msk [vmem:[#allocation5] sm:$0x1] %vm433, %v432
        %v435 = vld [vmem:[#allocation9] sm:$0xf]
        %v436 = vld [vmem:[#allocation9 + $0x4] sm:$0xf]
        %v437 = vld [vmem:[#allocation9 + $0x8] sm:$0xf]
        %v438 = vld [vmem:[#allocation9 + $0xc] sm:$0xf]
        %v443 = vunpack.c.l.b16 %v435
        %v444 = vunpack.c.l.b16 %v436
        %v445 = vunpack.c.l.b16 %v437
        %v446 = vunpack.c.l.b16 %v438
        %v447 = vpack.c.b16 %v444, %v443
        %v448 = vpack.c.b16 %v446, %v445
        %vm449 = vcmask 261120
        %v451 = vsel %vm449, %v447, 0
        %v454 = vsel %vm449, %v448, 0
        %456 = vmatpush.bf16.msra.mxu0 0
        %457 = vmatpush.bf16.msra.mxu0 0
        %458 = vmatpush.bf16.msra.mxu0 0
        %459 = vmatpush.bf16.msra.mxu0 0
        %460 = vmatpush.bf16.msra.mxu0 0
        %461 = vmatpush.bf16.msra.mxu0 0
        %462 = vmatpush.bf16.msra.mxu0 %v417
        %463 = vmatpush.bf16.msra.mxu0 %v416
        %464 = vmatmul.bf16.gmra.mxu0 %v451
        %v465 = vpop.f32.mrf.mxu0
        %v466 = vadd.f32 0.0, %v465
        %v467 = vpop.f32.mrf.mxu0
        %v468 = vadd.f32 0.0, %v467
        %469 = vmatmul.bf16.gmra.mxu0 %v454
        %v470 = vpop.f32.mrf.mxu0
        %v471 = vadd.f32 0.0, %v470
        %v472 = vpop.f32.mrf.mxu0
        %v473 = vadd.f32 0.0, %v472
        %474 = vdwg.mxu0
        %v475 = vmul.f32 %v466, %v466
        %v476 = vmul.f32 %v468, %v468
        %v477 = vmul.f32 %v471, %v471
        %v478 = vmul.f32 %v473, %v473
        %v479 = vadd.f32 %v475, %v476
        %v480 = vadd.f32 %v479, %v477
        %v481 = vadd.f32 %v480, %v478
        %v482 = vrot.slane %v481, 4
        %v483 = vadd.f32 %v481, %v482
        %v484 = vrot.slane %v483, 2
        %v485 = vadd.f32 %v483, %v484
        %v486 = vrot.slane %v485, 1
        %v487 = vadd.f32 %v485, %v486
        %v488 = vmax.f32 %v487, 1e-24
        %v489 = vrsqrt.pop %v488
        %v490 = vmul.f32 %v489, %v488
        %v491 = vmul.f32 %v490, %v489
        %v492 = vmul.f32 0.5, %v491
        %v493 = vsub.f32 1.5, %v492
        %v494 = vmul.f32 %v489, %v493
        %vm495 = vweird.f32 %v488
        %vm496 = vweird.f32 %v489
        %vm497 = vmor %vm495, %vm496
        %v498 = vsel %vm497, %v489, %v494
        %v499 = vmul.f32 %v466, %v498
        %v500 = vmul.f32 %v468, %v498
        %v501 = vmul.f32 %v471, %v498
        %v502 = vmul.f32 %v473, %v498
        %v503 = vld [vmem:[#allocation2] sm:$0xff]
        %v504 = vld [vmem:[#allocation2 + $0x8] sm:$0xff]
        %v505 = vld [vmem:[#allocation2 + $0x10] sm:$0xff]
        %v506 = vld [vmem:[#allocation2 + $0x18] sm:$0xff]
        %507 = vmax.xlane.f32.xlu0 %v499
        %v508 = vpop.xlane.xlu0 %507
        %509 = vmax.xlane.f32.xlu0 %v500
        %v510 = vpop.xlane.xlu0 %509
        %511 = vmax.xlane.f32.xlu0 %v501
        %v512 = vpop.xlane.xlu0 %511
        %513 = vmax.xlane.f32.xlu0 %v502
        %v514 = vpop.xlane.xlu0 %513
        %v515 = vmax.f32 %v503, %v508
        %v516 = vmax.f32 %v504, %v510
        %v517 = vmax.f32 %v505, %v512
        %v518 = vmax.f32 %v506, %v514
        %v519 = vsub.f32 %v503, %v515
        %v520 = vsub.f32 %v504, %v516
        %v521 = vsub.f32 %v505, %v517
        %v522 = vsub.f32 %v506, %v518
        %v523 = vmul.f32 %v519, 1.442695
        %v524 = vpow.pop %v523
        %v525 = vmul.f32 %v520, 1.442695
        %v526 = vpow.pop %v525
        %v527 = vmul.f32 %v521, 1.442695
        %v528 = vpow.pop %v527
        %v529 = vmul.f32 %v522, 1.442695
        %v530 = vpow.pop %v529
        %532 = vset.pattern.permute.xlu0 0
        %533 = vperm.xlu0 %532, %v515
        %v534 = vpop.permute.xlu0 %533
        %537 = vset.pattern.permute.xlu0 0
        %538 = vperm.xlu0 %537, %v516
        %v539 = vpop.permute.xlu0 %538
        %542 = vset.pattern.permute.xlu0 0
        %543 = vperm.xlu0 %542, %v517
        %v544 = vpop.permute.xlu0 %543
        %547 = vset.pattern.permute.xlu0 0
        %548 = vperm.xlu0 %547, %v518
        %v549 = vpop.permute.xlu0 %548
        %v551 = vsub.f32 %v499, %v534
        %v552 = vsub.f32 %v500, %v539
        %v553 = vsub.f32 %v501, %v544
        %v554 = vsub.f32 %v502, %v549
        %v555 = vmul.f32 %v551, 1.442695
        %v556 = vpow.pop %v555
        %v557 = vmul.f32 %v552, 1.442695
        %v558 = vpow.pop %v557
        %v559 = vmul.f32 %v553, 1.442695
        %v560 = vpow.pop %v559
        %v561 = vmul.f32 %v554, 1.442695
        %v562 = vpow.pop %v561
        %v563 = vld [vmem:[#allocation3] sm:$0xff]
        %v564 = vld [vmem:[#allocation3 + $0x8] sm:$0xff]
        %v565 = vld [vmem:[#allocation3 + $0x10] sm:$0xff]
        %v566 = vld [vmem:[#allocation3 + $0x18] sm:$0xff]
        %v567 = vmul.f32 %v524, %v563
        %v568 = vmul.f32 %v526, %v564
        %v569 = vmul.f32 %v528, %v565
        %v570 = vmul.f32 %v530, %v566
        %571 = vadd.xlane.f32.xlu0 %v556
        %v572 = vpop.xlane.xlu0 %571
        %573 = vadd.xlane.f32.xlu0 %v558
        %v574 = vpop.xlane.xlu0 %573
        %575 = vadd.xlane.f32.xlu0 %v560
        %v576 = vpop.xlane.xlu0 %575
        %577 = vadd.xlane.f32.xlu0 %v562
        %v578 = vpop.xlane.xlu0 %577
        %v579 = vadd.f32 %v567, %v572
        %v580 = vadd.f32 %v568, %v574
        %v581 = vadd.f32 %v569, %v576
        %v582 = vadd.f32 %v570, %v578
        %vm583 = vcmask 7168
        %584 = vst.msk [vmem:[#allocation3] sm:$0xff] %vm583, %v579
        %585 = vst.msk [vmem:[#allocation3 + $0x8] sm:$0xff] %vm583, %v580
        %586 = vst.msk [vmem:[#allocation3 + $0x10] sm:$0xff] %vm583, %v581
        %587 = vst.msk [vmem:[#allocation3 + $0x18] sm:$0xff] %vm583, %v582
        %v588 = vld [vmem:[#allocation4] sm:$0xff]
        %v589 = vld [vmem:[#allocation4 + $0x8] sm:$0xff]
        %v590 = vld [vmem:[#allocation4 + $0x10] sm:$0xff]
        %v591 = vld [vmem:[#allocation4 + $0x18] sm:$0xff]
        %593 = vset.pattern.permute.xlu0 0
        %594 = vperm.xlu0 %593, %v524
        %v595 = vpop.permute.xlu0 %594
        %598 = vset.pattern.permute.xlu0 0
        %599 = vperm.xlu0 %598, %v526
        %v600 = vpop.permute.xlu0 %599
        %603 = vset.pattern.permute.xlu0 0
        %604 = vperm.xlu0 %603, %v528
        %v605 = vpop.permute.xlu0 %604
        %608 = vset.pattern.permute.xlu0 0
        %609 = vperm.xlu0 %608, %v530
        %v610 = vpop.permute.xlu0 %609
        %v612 = vmul.f32 %v595, %v588
        %v613 = vmul.f32 %v600, %v589
        %v614 = vmul.f32 %v605, %v590
        %v615 = vmul.f32 %v610, %v591
        %v616 = vpack.c.bf16 %v558, %v556
        %v617 = vpack.c.bf16 %v562, %v560
        %618 = vmatpush.bf16.xpose.msra.mxu0 0
        %619 = vmatpush.bf16.xpose.msra.mxu0 0
        %620 = vmatpush.bf16.xpose.msra.mxu0 0
        %621 = vmatpush.bf16.xpose.msra.mxu0 0
        %622 = vmatpush.bf16.xpose.msra.mxu0 0
        %623 = vmatpush.bf16.xpose.msra.mxu0 0
        %624 = vmatpush.bf16.xpose.msra.mxu0 %v417
        %625 = vmatpush.bf16.xpose.msra.mxu0 %v416
        %626 = vmatmul.bf16.gmra.mxu0 %v616
        %v627 = vpop.f32.mrf.mxu0
        %v628 = vadd.f32 0.0, %v627
        %v629 = vpop.f32.mrf.mxu0
        %v630 = vadd.f32 0.0, %v629
        %631 = vmatmul.bf16.gmra.mxu0 %v617
        %v632 = vpop.f32.mrf.mxu0
        %v633 = vadd.f32 0.0, %v632
        %v634 = vpop.f32.mrf.mxu0
        %v635 = vadd.f32 0.0, %v634
        %636 = vdwg.mxu0
        %v637 = vadd.f32 %v612, %v628
        %v638 = vadd.f32 %v613, %v630
        %v639 = vadd.f32 %v614, %v633
        %v640 = vadd.f32 %v615, %v635
        %641 = vst.msk [vmem:[#allocation4] sm:$0xff] %vm449, %v637
        %642 = vst.msk [vmem:[#allocation4 + $0x8] sm:$0xff] %vm449, %v638
        %643 = vst.msk [vmem:[#allocation4 + $0x10] sm:$0xff] %vm449, %v639
        %644 = vst.msk [vmem:[#allocation4 + $0x18] sm:$0xff] %vm449, %v640
        %645 = vst.msk [vmem:[#allocation2] sm:$0xff] %vm583, %v515
        %646 = vst.msk [vmem:[#allocation2 + $0x8] sm:$0xff] %vm583, %v516
        %647 = vst.msk [vmem:[#allocation2 + $0x10] sm:$0xff] %vm583, %v517
        %648 = vst.msk [vmem:[#allocation2 + $0x18] sm:$0xff] %vm583, %v518
        %p649 = scmp.eq.s32.totalorder %s35, 1
        // Predicated region
        $region69: #{tpu_custom_call.1} parent=43 // pred_check
          %p650 = pneg %p649
        $region70: #{tpu_custom_call.1} parent=43 // pred_check_branch
          %652 = sbr.rel (%p650) target = $region72
        $region71: #{tpu_custom_call.1} parent=43 // pred_region
          %v653 = vld [vmem:[#allocation3] sm:$0xff]
          %v654 = vld [vmem:[#allocation3 + $0x8] sm:$0xff]
          %v655 = vld [vmem:[#allocation3 + $0x10] sm:$0xff]
          %v656 = vld [vmem:[#allocation3 + $0x18] sm:$0xff]
          %v657 = vrcp.pop %v653
          %v658 = vrcp.pop %v654
          %v659 = vrcp.pop %v655
          %v660 = vrcp.pop %v656
          %v661 = vld [vmem:[#allocation4] sm:$0xff]
          %v662 = vld [vmem:[#allocation4 + $0x8] sm:$0xff]
          %v663 = vld [vmem:[#allocation4 + $0x10] sm:$0xff]
          %v664 = vld [vmem:[#allocation4 + $0x18] sm:$0xff]
          %666 = vset.pattern.permute.xlu0 0
          %667 = vperm.xlu0 %666, %v657
          %v668 = vpop.permute.xlu0 %667
          %671 = vset.pattern.permute.xlu0 0
          %672 = vperm.xlu0 %671, %v658
          %v673 = vpop.permute.xlu0 %672
          %676 = vset.pattern.permute.xlu0 0
          %677 = vperm.xlu0 %676, %v659
          %v678 = vpop.permute.xlu0 %677
          %681 = vset.pattern.permute.xlu0 0
          %682 = vperm.xlu0 %681, %v660
          %v683 = vpop.permute.xlu0 %682
          %v685 = vmul.f32 %v661, %v668
          %v686 = vmul.f32 %v662, %v673
          %v687 = vmul.f32 %v663, %v678
          %v688 = vmul.f32 %v664, %v683
          %v689 = vld [vmem:[#allocation14] sm:$0xff]
          %v690 = vld [vmem:[#allocation14 + $0x8] sm:$0xff]
          %v691 = vld [vmem:[#allocation14 + $0x10] sm:$0xff]
          %v692 = vld [vmem:[#allocation14 + $0x18] sm:$0xff]
          %v693 = vmul.f32 %v685, %v689
          %v694 = vmul.f32 %v686, %v690
          %v695 = vmul.f32 %v687, %v691
          %v696 = vmul.f32 %v688, %v692
          %v697 = vld [vmem:[%s5] sm:$0x3]
          %v698 = vpack.c.bf16 %v694, %v693
          %v699 = vpack.c.bf16 %v696, %v695
          %v701 = vsel %vm449, %v697, 0
          %703 = vmatpush.bf16.msra.mxu0 0
          %704 = vmatpush.bf16.msra.mxu0 0
          %705 = vmatpush.bf16.msra.mxu0 0
          %706 = vmatpush.bf16.msra.mxu0 0
          %707 = vmatpush.bf16.msra.mxu0 0
          %708 = vmatpush.bf16.msra.mxu0 0
          %709 = vmatpush.bf16.msra.mxu0 %v699
          %710 = vmatpush.bf16.msra.mxu0 %v698
          %711 = vmatmul.bf16.gmra.mxu0 %v701
          %v712 = vpop.f32.mrf.mxu0
          %v713 = vadd.f32 0.0, %v712
          %v714 = vpop.f32.mrf.mxu0
          %715 = vdwg.mxu0
          %v716 = vpack.c.bf16 %v713, %v713
          %v717 = vld [vmem:[#allocation12] sm:$0xf]
          %v718 = vld [vmem:[#allocation12 + $0x4] sm:$0xf]
          %v719 = vld [vmem:[#allocation12 + $0x8] sm:$0xf]
          %v720 = vld [vmem:[#allocation12 + $0xc] sm:$0xf]
          %v725 = vunpack.c.l.b16 %v717
          %v726 = vunpack.c.l.b16 %v718
          %v727 = vunpack.c.l.b16 %v719
          %v728 = vunpack.c.l.b16 %v720
          %v729 = vpack.c.b16 %v726, %v725
          %v730 = vpack.c.b16 %v728, %v727
          %v732 = vsel %vm449, %v716, 0
          %v735 = vsel %vm449, %v729, 0
          %v738 = vsel %vm449, %v730, 0
          %740 = vmatpush.bf16.xpose.msra.mxu0 0
          %741 = vmatpush.bf16.xpose.msra.mxu0 0
          %742 = vmatpush.bf16.xpose.msra.mxu0 0
          %743 = vmatpush.bf16.xpose.msra.mxu0 0
          %744 = vmatpush.bf16.xpose.msra.mxu0 0
          %745 = vmatpush.bf16.xpose.msra.mxu0 0
          %746 = vmatpush.bf16.xpose.msra.mxu0 %v738
          %747 = vmatpush.bf16.xpose.msra.mxu0 %v735
          %748 = vmatmul.bf16.gmra.mxu0 %v732
          %v749 = vpop.f32.mrf.mxu0
          %v750 = vadd.f32 0.0, %v749
          %v751 = vpop.f32.mrf.mxu0
          %752 = vdwg.mxu0
          %vm753 = vcmask 257024
          %754 = vst.msk [vmem:[%s389] sm:$0xf] %vm753, %v750
          %v755 = vld [vmem:[#allocation5] sm:$0x1]
          %v756 = vmul.f32 %v755, 0.00390625
          %v757 = vpack.c.bf16 %v756, %v756
          %v758 = vld [vmem:[#allocation11] sm:$0xf]
          %v759 = vld [vmem:[#allocation11 + $0x4] sm:$0xf]
          %v760 = vld [vmem:[#allocation11 + $0x8] sm:$0xf]
          %v761 = vld [vmem:[#allocation11 + $0xc] sm:$0xf]
          %v766 = vunpack.c.l.b16 %v758
          %v767 = vunpack.c.l.b16 %v759
          %v768 = vunpack.c.l.b16 %v760
          %v769 = vunpack.c.l.b16 %v761
          %v770 = vpack.c.b16 %v767, %v766
          %v771 = vpack.c.b16 %v769, %v768
          %v773 = vsel %vm449, %v757, 0
          %v776 = vsel %vm449, %v770, 0
          %v779 = vsel %vm449, %v771, 0
          %781 = vmatpush.bf16.xpose.msra.mxu0 0
          %782 = vmatpush.bf16.xpose.msra.mxu0 0
          %783 = vmatpush.bf16.xpose.msra.mxu0 0
          %784 = vmatpush.bf16.xpose.msra.mxu0 0
          %785 = vmatpush.bf16.xpose.msra.mxu0 0
          %786 = vmatpush.bf16.xpose.msra.mxu0 0
          %787 = vmatpush.bf16.xpose.msra.mxu0 %v779
          %788 = vmatpush.bf16.xpose.msra.mxu0 %v776
          %789 = vmatmul.bf16.gmra.mxu0 %v773
          %v790 = vpop.f32.mrf.mxu0
          %v791 = vadd.f32 0.0, %v790
          %v792 = vpop.f32.mrf.mxu0
          %793 = vdwg.mxu0
          %794 = vst.msk [vmem:[%s382] sm:$0x1] %vm433, %v791
        $region72: #{tpu_custom_call.1} parent=43 // pred_fallthru
          _
        %s795 = sand.u32 %s183, 1
        %s796 = scalar_lea.sflag [#allocation8], %s795
        %s797 = sand.u32 %s183, 1
        %s798 = scalar_lea.vmem [#allocation15], %s797
        %s799 = sand.u32 %s209, 1
        %s800 = scalar_lea.sflag [#allocation17], %s799
        %s801 = sand.u32 %s209, 1
        %s802 = smul.addr %s801, 4
        %s803 = scalar_lea.vmem [#allocation16], %s802
        // Predicated region
        $region73: #{tpu_custom_call.1} parent=43 // pred_check
          %p804 = pneg %p193
        $region74: #{tpu_custom_call.1} parent=43 // pred_check_branch
          %806 = sbr.rel (%p804) target = $region76
        $region75: #{tpu_custom_call.1} parent=43 // pred_region
          %808 = vsyncadd %s796, 0
          %s809 = scalar_lea.hbm %s6, %s34
          %s811 = sshll.u32 %s798, 4
          %s812 = int_to_ptr.vmem [resolvable:$true] %s811
          %s813 = sshll.u32 %s809, 4
          %s814 = int_to_ptr.hbm [resolvable:$true] %s813
          %816 = dma.vmem_to_hbm [thread:$0]  %s812, 16, %s814, %s796
        $region76: #{tpu_custom_call.1} parent=43 // pred_fallthru
          _
        // Predicated region
        $region77: #{tpu_custom_call.1} parent=43 // pred_check
          %p817 = pneg %p219
        $region78: #{tpu_custom_call.1} parent=43 // pred_check_branch
          %819 = sbr.rel (%p817) target = $region80
        $region79: #{tpu_custom_call.1} parent=43 // pred_region
          %821 = vsyncadd %s800, 0
          %s822 = smul.addr %s34, 4
          %s823 = scalar_lea.hbm %s7, %s822
          %s825 = sshll.u32 %s803, 4
          %s826 = int_to_ptr.vmem [resolvable:$true] %s825
          %s827 = sshll.u32 %s823, 4
          %s828 = int_to_ptr.hbm [resolvable:$true] %s827
          %830 = dma.vmem_to_hbm [thread:$0]  %s826, 64, %s828, %s800
        $region80: #{tpu_custom_call.1} parent=43 // pred_fallthru
          _
      $region44: #{tpu_custom_call.1} parent=5 // pred_fallthru
        _
      %p831 = scmp.le.s32.totalorder 2, %s25
      // Predicated region
      $region81: #{tpu_custom_call.1} parent=5 // pred_check
        %p832 = pneg %p831
      $region82: #{tpu_custom_call.1} parent=5 // pred_check_branch
        %834 = sbr.rel (%p832) target = $region84
      $region83: #{tpu_custom_call.1} parent=5 // pred_region
        %s835 = ssub.s32 %s25, 2
        // Predicated region
        $region85: #{tpu_custom_call.1} parent=83 // pred_check
          %p836 = pneg %p199
        $region86: #{tpu_custom_call.1} parent=83 // pred_check_branch
          %838 = sbr.rel (%p836) target = $region88
        $region87: #{tpu_custom_call.1} parent=83 // pred_region
          %s839 = sand.u32 %s184, 1
          %s840 = scalar_lea.sflag [#allocation8], %s839
          %s841 = sand.u32 %s184, 1
          %s842 = scalar_lea.vmem [#allocation15], %s841
          %844 = dma.done %s840, 16
        $region88: #{tpu_custom_call.1} parent=83 // pred_fallthru
          _
        // Predicated region
        $region89: #{tpu_custom_call.1} parent=83 // pred_check
          %p845 = pneg %p225
        $region90: #{tpu_custom_call.1} parent=83 // pred_check_branch
          %847 = sbr.rel (%p845) target = $region92
        $region91: #{tpu_custom_call.1} parent=83 // pred_region
          %s848 = sand.u32 %s210, 1
          %s849 = scalar_lea.sflag [#allocation17], %s848
          %s850 = sand.u32 %s210, 1
          %s851 = smul.addr %s850, 4
          %s852 = scalar_lea.vmem [#allocation16], %s851
          %854 = dma.done %s849, 64
        $region92: #{tpu_custom_call.1} parent=83 // pred_fallthru
          _
      $region84: #{tpu_custom_call.1} parent=5 // pred_fallthru
        _
    $region6: #{tpu_custom_call.1} parent=1 // loop_footer
      %s29 = sadd.s32 1, %s25
    $region7: #{tpu_custom_call.1} parent=1 // loop_footer_branch
      %24 = sbr.rel target = $region3
    $region8: #{tpu_custom_call.1} parent=1 // loop_exit
      _
    %855 = vsyncpa [#allocation7], 1
    %s856 = scalar_lea.sflag [#allocation7], 1
    %857 = vsyncpa %s856, 1
    %858 = vsyncpa [#allocation10], 1
    %859 = vsyncpa [#allocation13], 1
    %860 = vsyncpa [#allocation8], 1
    %s861 = scalar_lea.sflag [#allocation8], 1
    %862 = vsyncpa %s861, 1
    %863 = vsyncpa [#allocation17], 1
    %s864 = scalar_lea.sflag [#allocation17], 1
    %865 = vsyncpa %s864, 1

</llo_original>
